<compile_context>
chip_gen: v7x
topology: tpu7x:2x2x1
jax: 0.10.0
libtpu: 0.0.40
codegen_flags: <defaults>
</compile_context>

<pallas_src>
import functools
import itertools

import numpy as np
import jax
import jax.numpy as jnp
from jax.experimental import pallas as pl
from jax.experimental.pallas import tpu as pltpu


# ----------------------------- chord indices (reference only) -----------------------
def get_chord_indices_assym(n_vec, n_link):
    rows = list(itertools.chain(*[[i for _ in range(n_link)] for i in range(n_vec)]))
    cols = list(itertools.chain(
        *[[i] + [(i + 2 ** k) % n_vec for k in range(n_link - 1)] for i in range(n_vec)]))
    return rows, cols


# ----------------------------- exact GELU (erf formulation, like nn.GELU()) ---------
def _erf_approx(x):
    # Abramowitz & Stegun 7.1.26, max abs error ~1.5e-7; exp + reciprocal ride the EUP.
    p = np.float32(0.3275911)
    a1, a2, a3, a4, a5 = (np.float32(0.254829592), np.float32(-0.284496736),
                          np.float32(1.421413741), np.float32(-1.453152027),
                          np.float32(1.061405429))
    s = jnp.where(x >= 0.0, 1.0, -1.0).astype(jnp.float32)
    ax = jnp.abs(x)
    t = pl.reciprocal(1.0 + p * ax, approx=False)
    poly = ((((a5 * t + a4) * t + a3) * t + a2) * t + a1) * t
    return s * (1.0 - poly * jnp.exp(-ax * ax))


def _gelu_exact(x):
    return 0.5 * x * (1.0 + _erf_approx(x * np.float32(1.0 / np.sqrt(2.0))))


# ----------------------------- Pallas kernel ----------------------------------------
def _attention_kernel(n_w, n_links, n_vec,
                      v_ref, data_ref,
                      gw1_ref, gb1_ref, gw2_ref, gb2_ref,
                      a1_ref, c1_ref, a2_ref, c2_ref,
                      out_ref):
    f32, bf16 = jnp.float32, jnp.bfloat16
    e = v_ref.shape[-1]

    v0 = v_ref[0]                                                     # (N, E) f32
    d = data_ref[0]                                                   # (N, E) f32

    # ---- V = self.g(V): Linear(E,E) -> GELU -> Linear(E,E) -------------------------
    h = _gelu_exact(jnp.dot(v0.astype(bf16), gw1_ref[...].astype(bf16),
                            preferred_element_type=f32) + gb1_ref[...])
    v = jnp.dot(h.astype(bf16), gw2_ref[...].astype(bf16),
                preferred_element_type=f32) + gb2_ref[...]            # (N, E) f32

    # ---- hoisted fs[m](data) for all layers (data is layer-invariant) --------------
    # One lane-dense (N, n_W*E) matmul for all first Linears + GELU, then per-layer
    # small (E, n_links) matmuls.
    db = d.astype(bf16)
    hcat = _gelu_exact(jnp.dot(db, a1_ref[...].astype(bf16),
                               preferred_element_type=f32) + c1_ref[...])   # (N, n_W*E)
    ws = []
    for m in range(n_w):
        hm = hcat[:, m * e:(m + 1) * e]                               # (N, E)
        wm = jnp.dot(hm.astype(bf16), a2_ref[m].astype(bf16),
                     preferred_element_type=f32) + c2_ref[m]          # (N, n_links)
        ws.append(wm)

    # ---- chord mixing layers: spmm via cyclic rolls + residual ----------------------
    # spmm row i = w[i,0]*V[i] + sum_k w[i,k+1]*V[(i + 2^k) % N]
    # roll(V, N - 2^k, axis=0)[i] == V[(i + 2^k) % N]
    for m in range(n_w):
        w = ws[m]
        acc = w[:, 0:1] * v
        for k in range(n_links - 1):
            shift = (n_vec - (2 ** k)) % n_vec
            vk = v if shift == 0 else pltpu.roll(v, shift, axis=0)
            acc = acc + w[:, k + 1:k + 2] * vk
        v = acc + v                                                   # + res_conn

    out_ref[0] = v


def attention_module_forward(V, data, params):
    B, N, E = V.shape
    n_W = int(params["A1"].shape[0])
    n_links = int(params["A2"].shape[-1])

    # Wrapper-side (one-time) packing of the per-layer first fs Linear into a single
    # lane-dense weight: A1_cat[i, m*E + j] = A1[m, i, j]
    A1_cat = jnp.transpose(params["A1"], (1, 0, 2)).reshape(E, n_W * E)
    c1_cat = jnp.transpose(params["c1"], (1, 0, 2)).reshape(1, n_W * E)

    kernel = functools.partial(_attention_kernel, n_W, n_links, N)

    in_specs = [
        pl.BlockSpec((1, N, E), lambda b: (b, 0, 0)),              # V
        pl.BlockSpec((1, N, E), lambda b: (b, 0, 0)),              # data
        pl.BlockSpec((E, E), lambda b: (0, 0)),                    # g.W1
        pl.BlockSpec((1, E), lambda b: (0, 0)),                    # g.b1
        pl.BlockSpec((E, E), lambda b: (0, 0)),                    # g.W2
        pl.BlockSpec((1, E), lambda b: (0, 0)),                    # g.b2
        pl.BlockSpec((E, n_W * E), lambda b: (0, 0)),              # fs.*.W1 (concat)
        pl.BlockSpec((1, n_W * E), lambda b: (0, 0)),              # fs.*.b1 (concat)
        pl.BlockSpec((n_W, E, n_links), lambda b: (0, 0, 0)),      # fs.*.W2 (stacked)
        pl.BlockSpec((n_W, 1, n_links), lambda b: (0, 0, 0)),      # fs.*.b2 (stacked)
    ]
    out_spec = pl.BlockSpec((1, N, E), lambda b: (b, 0, 0))

    return pl.pallas_call(
        kernel,
        out_shape=jax.ShapeDtypeStruct((B, N, E), jnp.float32),
        grid=(B,),
        in_specs=in_specs,
        out_specs=out_spec,
        compiler_params=pltpu.CompilerParams(
            dimension_semantics=("parallel",)),
    )(V, data,
      params["gW1"], params["gb1"], params["gW2"], params["gb2"],
      A1_cat, c1_cat, params["A2"], params["c2"])


# ----------------------------- deterministic parameter init -------------------------
def init_params(key, E, n_W, n_links):
    keys = jax.random.split(key, 8)
    sc = np.float32(0.2 / np.sqrt(E))
    return {
        "gW1": jax.random.normal(keys[0], (E, E), jnp.float32) * sc,
        "gb1": jax.random.normal(keys[1], (1, E), jnp.float32) * 0.01,
        "gW2": jax.random.normal(keys[2], (E, E), jnp.float32) * sc,
        "gb2": jax.random.normal(keys[3], (1, E), jnp.float32) * 0.01,
        "A1": jax.random.normal(keys[4], (n_W, E, E), jnp.float32) * sc,
        "c1": jax.random.normal(keys[5], (n_W, 1, E), jnp.float32) * 0.01,
        "A2": jax.random.normal(keys[6], (n_W, E, n_links), jnp.float32) * sc,
        "c2": jax.random.normal(keys[7], (n_W, 1, n_links), jnp.float32) * 0.01,
    }


# ----------------------------- pure-JAX reference (for verification) ----------------
def ref_forward(V, data, params, N, n_W, n_links):
    _, cols = get_chord_indices_assym(N, n_links)
    cols = jnp.asarray(np.array(cols, dtype=np.int32).reshape(N, n_links))
    gelu = lambda x: jax.nn.gelu(x, approximate=False)   # nn.GELU() default = erf-exact
    V1 = gelu(V @ params["gW1"] + params["gb1"]) @ params["gW2"] + params["gb2"]
    for m in range(n_W):
        res = V1
        W = (gelu(data @ params["A1"][m] + params["c1"][m])
             @ params["A2"][m] + params["c2"][m])        # (B, N, L)
        gathered = V1[:, cols, :]                        # (B, N, L, E)
        V1 = jnp.einsum("bnl,bnle->bne", W, gathered) + res
    return V1


if __name__ == "__main__":
    B, N, E = 2, 8, 32            # batch, max_seq_len, embedding_size
    n_W = int(np.log2(N))         # 3
    n_links = n_W + 1             # 4   (protocol = 'chord')

    key = jax.random.PRNGKey(0)
    k_v, k_d, k_p = jax.random.split(key, 3)
    V = jax.random.normal(k_v, (B, N, E), jnp.float32)
    data = jax.random.normal(k_d, (B, N, E), jnp.float32)
    params = init_params(k_p, E, n_W, n_links)

    out = attention_module_forward(V, data, params)
    out = jax.block_until_ready(out)

    ref = ref_forward(V, data, params, N, n_W, n_links)
    # bf16 MXU operands (f32 accumulation) in the kernel -> tolerance set accordingly.
    np.testing.assert_allclose(np.asarray(out), np.asarray(ref), rtol=2e-2, atol=2e-2)
    print("KERNEL_OK")
</pallas_src>

<mosaic_0001>
module attributes {stable_mosaic.version = 11 : i64} {
  func.func @_attention_kernel(%arg0: i32, %arg1: memref<1x8x32xf32, #tpu.memory_space<vmem>>, %arg2: memref<1x8x32xf32, #tpu.memory_space<vmem>>, %arg3: memref<32x32xf32, #tpu.memory_space<vmem>>, %arg4: memref<1x32xf32, #tpu.memory_space<vmem>>, %arg5: memref<32x32xf32, #tpu.memory_space<vmem>>, %arg6: memref<1x32xf32, #tpu.memory_space<vmem>>, %arg7: memref<32x96xf32, #tpu.memory_space<vmem>>, %arg8: memref<1x96xf32, #tpu.memory_space<vmem>>, %arg9: memref<3x32x4xf32, #tpu.memory_space<vmem>>, %arg10: memref<3x1x4xf32, #tpu.memory_space<vmem>>, %arg11: memref<1x8x32xf32, #tpu.memory_space<vmem>>) attributes {dimension_semantics = [#tpu.dimension_semantics<parallel>], iteration_bounds = array<i64: 2>, scalar_prefetch = 0 : i64, scratch_operands = 0 : i64, tpu.core_type = #tpu.core_type<tc>, window_params = [{transform_indices = @transform_0, window_bounds = array<i64: 1, 8, 32>}, {transform_indices = @transform_1, window_bounds = array<i64: 1, 8, 32>}, {pipeline_mode = #tpu.pipeline_mode<synchronous>, transform_indices = @transform_2, window_bounds = array<i64: 32, 32>}, {pipeline_mode = #tpu.pipeline_mode<synchronous>, transform_indices = @transform_3, window_bounds = array<i64: 1, 32>}, {pipeline_mode = #tpu.pipeline_mode<synchronous>, transform_indices = @transform_4, window_bounds = array<i64: 32, 32>}, {pipeline_mode = #tpu.pipeline_mode<synchronous>, transform_indices = @transform_5, window_bounds = array<i64: 1, 32>}, {pipeline_mode = #tpu.pipeline_mode<synchronous>, transform_indices = @transform_6, window_bounds = array<i64: 32, 96>}, {pipeline_mode = #tpu.pipeline_mode<synchronous>, transform_indices = @transform_7, window_bounds = array<i64: 1, 96>}, {pipeline_mode = #tpu.pipeline_mode<synchronous>, transform_indices = @transform_8, window_bounds = array<i64: 3, 32, 4>}, {pipeline_mode = #tpu.pipeline_mode<synchronous>, transform_indices = @transform_9, window_bounds = array<i64: 3, 1, 4>}, {transform_indices = @transform_10, window_bounds = array<i64: 1, 8, 32>}]} {
    %c0 = arith.constant 0 : index
    %c0_0 = arith.constant 0 : index
    %c0_1 = arith.constant 0 : index
    %0 = vector.load %arg1[%c0, %c0_0, %c0_1] : memref<1x8x32xf32, #tpu.memory_space<vmem>>, vector<1x8x32xf32>
    %1 = vector.shape_cast %0 : vector<1x8x32xf32> to vector<8x32xf32>
    %c0_2 = arith.constant 0 : index
    %c0_3 = arith.constant 0 : index
    %c0_4 = arith.constant 0 : index
    %2 = vector.load %arg2[%c0_2, %c0_3, %c0_4] : memref<1x8x32xf32, #tpu.memory_space<vmem>>, vector<1x8x32xf32>
    %3 = vector.shape_cast %2 : vector<1x8x32xf32> to vector<8x32xf32>
    %4 = arith.truncf %1 : vector<8x32xf32> to vector<8x32xbf16>
    %c0_5 = arith.constant 0 : index
    %c0_6 = arith.constant 0 : index
    %5 = vector.load %arg3[%c0_5, %c0_6] : memref<32x32xf32, #tpu.memory_space<vmem>>, vector<32x32xf32>
    %6 = arith.truncf %5 : vector<32x32xf32> to vector<32x32xbf16>
    %cst = arith.constant dense<0.000000e+00> : vector<8x32xf32>
    %7 = tpu.matmul %4, %6, %cst {dimension_numbers = #tpu.dot_dimension_numbers<[1], [0], [0], [1], [0, 0, 1, 1], [], []>} : vector<8x32xbf16>, vector<32x32xbf16>, vector<8x32xf32> -> vector<8x32xf32>
    %c0_7 = arith.constant 0 : index
    %c0_8 = arith.constant 0 : index
    %8 = vector.load %arg4[%c0_7, %c0_8] : memref<1x32xf32, #tpu.memory_space<vmem>>, vector<1x32xf32>
    %9 = vector.broadcast %8 : vector<1x32xf32> to vector<8x32xf32>
    %10 = arith.addf %7, %9 : vector<8x32xf32>
    %cst_9 = arith.constant 5.000000e-01 : f32
    %11 = vector.broadcast %cst_9 : f32 to vector<8x32xf32>
    %12 = arith.mulf %11, %10 : vector<8x32xf32>
    %cst_10 = arith.constant 0.707106769 : f32
    %13 = vector.broadcast %cst_10 : f32 to vector<8x32xf32>
    %14 = arith.mulf %10, %13 : vector<8x32xf32>
    %cst_11 = arith.constant 0.000000e+00 : f32
    %15 = vector.broadcast %cst_11 : f32 to vector<8x32xf32>
    %16 = arith.cmpf oge, %14, %15 : vector<8x32xf32>
    %cst_12 = arith.constant 1.000000e+00 : f32
    %cst_13 = arith.constant -1.000000e+00 : f32
    %17 = vector.broadcast %cst_12 : f32 to vector<8x32xf32>
    %18 = vector.broadcast %cst_13 : f32 to vector<8x32xf32>
    %19 = arith.select %16, %17, %18 : vector<8x32xi1>, vector<8x32xf32>
    %20 = math.absf %14 : vector<8x32xf32>
    %cst_14 = arith.constant 0.327591091 : f32
    %21 = vector.broadcast %cst_14 : f32 to vector<8x32xf32>
    %22 = arith.mulf %21, %20 : vector<8x32xf32>
    %cst_15 = arith.constant 1.000000e+00 : f32
    %23 = vector.broadcast %cst_15 : f32 to vector<8x32xf32>
    %24 = arith.addf %23, %22 : vector<8x32xf32>
    %25 = tpu.reciprocal %24 : vector<8x32xf32> -> vector<8x32xf32>
    %cst_16 = arith.constant 1.06140542 : f32
    %26 = vector.broadcast %cst_16 : f32 to vector<8x32xf32>
    %27 = arith.mulf %26, %25 : vector<8x32xf32>
    %cst_17 = arith.constant -1.45315206 : f32
    %28 = vector.broadcast %cst_17 : f32 to vector<8x32xf32>
    %29 = arith.addf %27, %28 : vector<8x32xf32>
    %30 = arith.mulf %29, %25 : vector<8x32xf32>
    %cst_18 = arith.constant 1.42141378 : f32
    %31 = vector.broadcast %cst_18 : f32 to vector<8x32xf32>
    %32 = arith.addf %30, %31 : vector<8x32xf32>
    %33 = arith.mulf %32, %25 : vector<8x32xf32>
    %cst_19 = arith.constant -0.284496725 : f32
    %34 = vector.broadcast %cst_19 : f32 to vector<8x32xf32>
    %35 = arith.addf %33, %34 : vector<8x32xf32>
    %36 = arith.mulf %35, %25 : vector<8x32xf32>
    %cst_20 = arith.constant 0.254829586 : f32
    %37 = vector.broadcast %cst_20 : f32 to vector<8x32xf32>
    %38 = arith.addf %36, %37 : vector<8x32xf32>
    %39 = arith.mulf %38, %25 : vector<8x32xf32>
    %cst_21 = arith.constant 0.000000e+00 : f32
    %40 = vector.broadcast %cst_21 : f32 to vector<8x32xf32>
    %41 = arith.subf %40, %20 : vector<8x32xf32>
    %42 = arith.mulf %41, %20 : vector<8x32xf32>
    %43 = math.exp %42 : vector<8x32xf32>
    %44 = arith.mulf %39, %43 : vector<8x32xf32>
    %cst_22 = arith.constant 1.000000e+00 : f32
    %45 = vector.broadcast %cst_22 : f32 to vector<8x32xf32>
    %46 = arith.subf %45, %44 : vector<8x32xf32>
    %47 = arith.mulf %19, %46 : vector<8x32xf32>
    %cst_23 = arith.constant 1.000000e+00 : f32
    %48 = vector.broadcast %cst_23 : f32 to vector<8x32xf32>
    %49 = arith.addf %48, %47 : vector<8x32xf32>
    %50 = arith.mulf %12, %49 : vector<8x32xf32>
    %51 = arith.truncf %50 : vector<8x32xf32> to vector<8x32xbf16>
    %c0_24 = arith.constant 0 : index
    %c0_25 = arith.constant 0 : index
    %52 = vector.load %arg5[%c0_24, %c0_25] : memref<32x32xf32, #tpu.memory_space<vmem>>, vector<32x32xf32>
    %53 = arith.truncf %52 : vector<32x32xf32> to vector<32x32xbf16>
    %cst_26 = arith.constant dense<0.000000e+00> : vector<8x32xf32>
    %54 = tpu.matmul %51, %53, %cst_26 {dimension_numbers = #tpu.dot_dimension_numbers<[1], [0], [0], [1], [0, 0, 1, 1], [], []>} : vector<8x32xbf16>, vector<32x32xbf16>, vector<8x32xf32> -> vector<8x32xf32>
    %c0_27 = arith.constant 0 : index
    %c0_28 = arith.constant 0 : index
    %55 = vector.load %arg6[%c0_27, %c0_28] : memref<1x32xf32, #tpu.memory_space<vmem>>, vector<1x32xf32>
    %56 = vector.broadcast %55 : vector<1x32xf32> to vector<8x32xf32>
    %57 = arith.addf %54, %56 : vector<8x32xf32>
    %58 = arith.truncf %3 : vector<8x32xf32> to vector<8x32xbf16>
    %c0_29 = arith.constant 0 : index
    %c0_30 = arith.constant 0 : index
    %59 = vector.load %arg7[%c0_29, %c0_30] : memref<32x96xf32, #tpu.memory_space<vmem>>, vector<32x96xf32>
    %60 = arith.truncf %59 : vector<32x96xf32> to vector<32x96xbf16>
    %cst_31 = arith.constant dense<0.000000e+00> : vector<8x96xf32>
    %61 = tpu.matmul %58, %60, %cst_31 {dimension_numbers = #tpu.dot_dimension_numbers<[1], [0], [0], [1], [0, 0, 1, 1], [], []>} : vector<8x32xbf16>, vector<32x96xbf16>, vector<8x96xf32> -> vector<8x96xf32>
    %c0_32 = arith.constant 0 : index
    %c0_33 = arith.constant 0 : index
    %62 = vector.load %arg8[%c0_32, %c0_33] : memref<1x96xf32, #tpu.memory_space<vmem>>, vector<1x96xf32>
    %63 = vector.broadcast %62 : vector<1x96xf32> to vector<8x96xf32>
    %64 = arith.addf %61, %63 : vector<8x96xf32>
    %cst_34 = arith.constant 5.000000e-01 : f32
    %65 = vector.broadcast %cst_34 : f32 to vector<8x96xf32>
    %66 = arith.mulf %65, %64 : vector<8x96xf32>
    %cst_35 = arith.constant 0.707106769 : f32
    %67 = vector.broadcast %cst_35 : f32 to vector<8x96xf32>
    %68 = arith.mulf %64, %67 : vector<8x96xf32>
    %cst_36 = arith.constant 0.000000e+00 : f32
    %69 = vector.broadcast %cst_36 : f32 to vector<8x96xf32>
    %70 = arith.cmpf oge, %68, %69 : vector<8x96xf32>
    %cst_37 = arith.constant 1.000000e+00 : f32
    %cst_38 = arith.constant -1.000000e+00 : f32
    %71 = vector.broadcast %cst_37 : f32 to vector<8x96xf32>
    %72 = vector.broadcast %cst_38 : f32 to vector<8x96xf32>
    %73 = arith.select %70, %71, %72 : vector<8x96xi1>, vector<8x96xf32>
    %74 = math.absf %68 : vector<8x96xf32>
    %cst_39 = arith.constant 0.327591091 : f32
    %75 = vector.broadcast %cst_39 : f32 to vector<8x96xf32>
    %76 = arith.mulf %75, %74 : vector<8x96xf32>
    %cst_40 = arith.constant 1.000000e+00 : f32
    %77 = vector.broadcast %cst_40 : f32 to vector<8x96xf32>
    %78 = arith.addf %77, %76 : vector<8x96xf32>
    %79 = tpu.reciprocal %78 : vector<8x96xf32> -> vector<8x96xf32>
    %cst_41 = arith.constant 1.06140542 : f32
    %80 = vector.broadcast %cst_41 : f32 to vector<8x96xf32>
    %81 = arith.mulf %80, %79 : vector<8x96xf32>
    %cst_42 = arith.constant -1.45315206 : f32
    %82 = vector.broadcast %cst_42 : f32 to vector<8x96xf32>
    %83 = arith.addf %81, %82 : vector<8x96xf32>
    %84 = arith.mulf %83, %79 : vector<8x96xf32>
    %cst_43 = arith.constant 1.42141378 : f32
    %85 = vector.broadcast %cst_43 : f32 to vector<8x96xf32>
    %86 = arith.addf %84, %85 : vector<8x96xf32>
    %87 = arith.mulf %86, %79 : vector<8x96xf32>
    %cst_44 = arith.constant -0.284496725 : f32
    %88 = vector.broadcast %cst_44 : f32 to vector<8x96xf32>
    %89 = arith.addf %87, %88 : vector<8x96xf32>
    %90 = arith.mulf %89, %79 : vector<8x96xf32>
    %cst_45 = arith.constant 0.254829586 : f32
    %91 = vector.broadcast %cst_45 : f32 to vector<8x96xf32>
    %92 = arith.addf %90, %91 : vector<8x96xf32>
    %93 = arith.mulf %92, %79 : vector<8x96xf32>
    %cst_46 = arith.constant 0.000000e+00 : f32
    %94 = vector.broadcast %cst_46 : f32 to vector<8x96xf32>
    %95 = arith.subf %94, %74 : vector<8x96xf32>
    %96 = arith.mulf %95, %74 : vector<8x96xf32>
    %97 = math.exp %96 : vector<8x96xf32>
    %98 = arith.mulf %93, %97 : vector<8x96xf32>
    %cst_47 = arith.constant 1.000000e+00 : f32
    %99 = vector.broadcast %cst_47 : f32 to vector<8x96xf32>
    %100 = arith.subf %99, %98 : vector<8x96xf32>
    %101 = arith.mulf %73, %100 : vector<8x96xf32>
    %cst_48 = arith.constant 1.000000e+00 : f32
    %102 = vector.broadcast %cst_48 : f32 to vector<8x96xf32>
    %103 = arith.addf %102, %101 : vector<8x96xf32>
    %104 = arith.mulf %66, %103 : vector<8x96xf32>
    %105 = vector.extract_strided_slice %104 {offsets = [0, 0], sizes = [8, 32], strides = [1, 1]} : vector<8x96xf32> to vector<8x32xf32>
    %106 = arith.truncf %105 : vector<8x32xf32> to vector<8x32xbf16>
    %c0_49 = arith.constant 0 : index
    %c0_50 = arith.constant 0 : index
    %c0_51 = arith.constant 0 : index
    %107 = vector.load %arg9[%c0_49, %c0_50, %c0_51] : memref<3x32x4xf32, #tpu.memory_space<vmem>>, vector<1x32x4xf32>
    %108 = vector.shape_cast %107 : vector<1x32x4xf32> to vector<32x4xf32>
    %109 = arith.truncf %108 : vector<32x4xf32> to vector<32x4xbf16>
    %cst_52 = arith.constant dense<0.000000e+00> : vector<8x4xf32>
    %110 = tpu.matmul %106, %109, %cst_52 {dimension_numbers = #tpu.dot_dimension_numbers<[1], [0], [0], [1], [0, 0, 1, 1], [], []>} : vector<8x32xbf16>, vector<32x4xbf16>, vector<8x4xf32> -> vector<8x4xf32>
    %c0_53 = arith.constant 0 : index
    %c0_54 = arith.constant 0 : index
    %c0_55 = arith.constant 0 : index
    %111 = vector.load %arg10[%c0_53, %c0_54, %c0_55] : memref<3x1x4xf32, #tpu.memory_space<vmem>>, vector<1x1x4xf32>
    %112 = vector.shape_cast %111 : vector<1x1x4xf32> to vector<1x4xf32>
    %113 = vector.broadcast %112 : vector<1x4xf32> to vector<8x4xf32>
    %114 = arith.addf %110, %113 : vector<8x4xf32>
    %115 = vector.extract_strided_slice %104 {offsets = [0, 32], sizes = [8, 32], strides = [1, 1]} : vector<8x96xf32> to vector<8x32xf32>
    %116 = arith.truncf %115 : vector<8x32xf32> to vector<8x32xbf16>
    %c1 = arith.constant 1 : index
    %c0_56 = arith.constant 0 : index
    %c0_57 = arith.constant 0 : index
    %117 = vector.load %arg9[%c1, %c0_56, %c0_57] : memref<3x32x4xf32, #tpu.memory_space<vmem>>, vector<1x32x4xf32>
    %118 = vector.shape_cast %117 : vector<1x32x4xf32> to vector<32x4xf32>
    %119 = arith.truncf %118 : vector<32x4xf32> to vector<32x4xbf16>
    %cst_58 = arith.constant dense<0.000000e+00> : vector<8x4xf32>
    %120 = tpu.matmul %116, %119, %cst_58 {dimension_numbers = #tpu.dot_dimension_numbers<[1], [0], [0], [1], [0, 0, 1, 1], [], []>} : vector<8x32xbf16>, vector<32x4xbf16>, vector<8x4xf32> -> vector<8x4xf32>
    %c1_59 = arith.constant 1 : index
    %c0_60 = arith.constant 0 : index
    %c0_61 = arith.constant 0 : index
    %121 = vector.load %arg10[%c1_59, %c0_60, %c0_61] : memref<3x1x4xf32, #tpu.memory_space<vmem>>, vector<1x1x4xf32>
    %122 = vector.shape_cast %121 : vector<1x1x4xf32> to vector<1x4xf32>
    %123 = vector.broadcast %122 : vector<1x4xf32> to vector<8x4xf32>
    %124 = arith.addf %120, %123 : vector<8x4xf32>
    %125 = vector.extract_strided_slice %104 {offsets = [0, 64], sizes = [8, 32], strides = [1, 1]} : vector<8x96xf32> to vector<8x32xf32>
    %126 = arith.truncf %125 : vector<8x32xf32> to vector<8x32xbf16>
    %c2 = arith.constant 2 : index
    %c0_62 = arith.constant 0 : index
    %c0_63 = arith.constant 0 : index
    %127 = vector.load %arg9[%c2, %c0_62, %c0_63] : memref<3x32x4xf32, #tpu.memory_space<vmem>>, vector<1x32x4xf32>
    %128 = vector.shape_cast %127 : vector<1x32x4xf32> to vector<32x4xf32>
    %129 = arith.truncf %128 : vector<32x4xf32> to vector<32x4xbf16>
    %cst_64 = arith.constant dense<0.000000e+00> : vector<8x4xf32>
    %130 = tpu.matmul %126, %129, %cst_64 {dimension_numbers = #tpu.dot_dimension_numbers<[1], [0], [0], [1], [0, 0, 1, 1], [], []>} : vector<8x32xbf16>, vector<32x4xbf16>, vector<8x4xf32> -> vector<8x4xf32>
    %c2_65 = arith.constant 2 : index
    %c0_66 = arith.constant 0 : index
    %c0_67 = arith.constant 0 : index
    %131 = vector.load %arg10[%c2_65, %c0_66, %c0_67] : memref<3x1x4xf32, #tpu.memory_space<vmem>>, vector<1x1x4xf32>
    %132 = vector.shape_cast %131 : vector<1x1x4xf32> to vector<1x4xf32>
    %133 = vector.broadcast %132 : vector<1x4xf32> to vector<8x4xf32>
    %134 = arith.addf %130, %133 : vector<8x4xf32>
    %135 = vector.extract_strided_slice %114 {offsets = [0, 0], sizes = [8, 1], strides = [1, 1]} : vector<8x4xf32> to vector<8x1xf32>
    %136 = vector.broadcast %135 : vector<8x1xf32> to vector<8x32xf32>
    %137 = arith.mulf %136, %57 : vector<8x32xf32>
    %c7_i32 = arith.constant 7 : i32
    %138 = tpu.dynamic_rotate %57 by %c7_i32 dim 0 : vector<8x32xf32>, i32 -> vector<8x32xf32>
    %139 = vector.extract_strided_slice %114 {offsets = [0, 1], sizes = [8, 1], strides = [1, 1]} : vector<8x4xf32> to vector<8x1xf32>
    %140 = vector.broadcast %139 : vector<8x1xf32> to vector<8x32xf32>
    %141 = arith.mulf %140, %138 : vector<8x32xf32>
    %142 = arith.addf %137, %141 : vector<8x32xf32>
    %c6_i32 = arith.constant 6 : i32
    %143 = tpu.dynamic_rotate %57 by %c6_i32 dim 0 : vector<8x32xf32>, i32 -> vector<8x32xf32>
    %144 = vector.extract_strided_slice %114 {offsets = [0, 2], sizes = [8, 1], strides = [1, 1]} : vector<8x4xf32> to vector<8x1xf32>
    %145 = vector.broadcast %144 : vector<8x1xf32> to vector<8x32xf32>
    %146 = arith.mulf %145, %143 : vector<8x32xf32>
    %147 = arith.addf %142, %146 : vector<8x32xf32>
    %c4_i32 = arith.constant 4 : i32
    %148 = tpu.dynamic_rotate %57 by %c4_i32 dim 0 : vector<8x32xf32>, i32 -> vector<8x32xf32>
    %149 = vector.extract_strided_slice %114 {offsets = [0, 3], sizes = [8, 1], strides = [1, 1]} : vector<8x4xf32> to vector<8x1xf32>
    %150 = vector.broadcast %149 : vector<8x1xf32> to vector<8x32xf32>
    %151 = arith.mulf %150, %148 : vector<8x32xf32>
    %152 = arith.addf %147, %151 : vector<8x32xf32>
    %153 = arith.addf %152, %57 : vector<8x32xf32>
    %154 = vector.extract_strided_slice %124 {offsets = [0, 0], sizes = [8, 1], strides = [1, 1]} : vector<8x4xf32> to vector<8x1xf32>
    %155 = vector.broadcast %154 : vector<8x1xf32> to vector<8x32xf32>
    %156 = arith.mulf %155, %153 : vector<8x32xf32>
    %c7_i32_68 = arith.constant 7 : i32
    %157 = tpu.dynamic_rotate %153 by %c7_i32_68 dim 0 : vector<8x32xf32>, i32 -> vector<8x32xf32>
    %158 = vector.extract_strided_slice %124 {offsets = [0, 1], sizes = [8, 1], strides = [1, 1]} : vector<8x4xf32> to vector<8x1xf32>
    %159 = vector.broadcast %158 : vector<8x1xf32> to vector<8x32xf32>
    %160 = arith.mulf %159, %157 : vector<8x32xf32>
    %161 = arith.addf %156, %160 : vector<8x32xf32>
    %c6_i32_69 = arith.constant 6 : i32
    %162 = tpu.dynamic_rotate %153 by %c6_i32_69 dim 0 : vector<8x32xf32>, i32 -> vector<8x32xf32>
    %163 = vector.extract_strided_slice %124 {offsets = [0, 2], sizes = [8, 1], strides = [1, 1]} : vector<8x4xf32> to vector<8x1xf32>
    %164 = vector.broadcast %163 : vector<8x1xf32> to vector<8x32xf32>
    %165 = arith.mulf %164, %162 : vector<8x32xf32>
    %166 = arith.addf %161, %165 : vector<8x32xf32>
    %c4_i32_70 = arith.constant 4 : i32
    %167 = tpu.dynamic_rotate %153 by %c4_i32_70 dim 0 : vector<8x32xf32>, i32 -> vector<8x32xf32>
    %168 = vector.extract_strided_slice %124 {offsets = [0, 3], sizes = [8, 1], strides = [1, 1]} : vector<8x4xf32> to vector<8x1xf32>
    %169 = vector.broadcast %168 : vector<8x1xf32> to vector<8x32xf32>
    %170 = arith.mulf %169, %167 : vector<8x32xf32>
    %171 = arith.addf %166, %170 : vector<8x32xf32>
    %172 = arith.addf %171, %153 : vector<8x32xf32>
    %173 = vector.extract_strided_slice %134 {offsets = [0, 0], sizes = [8, 1], strides = [1, 1]} : vector<8x4xf32> to vector<8x1xf32>
    %174 = vector.broadcast %173 : vector<8x1xf32> to vector<8x32xf32>
    %175 = arith.mulf %174, %172 : vector<8x32xf32>
    %c7_i32_71 = arith.constant 7 : i32
    %176 = tpu.dynamic_rotate %172 by %c7_i32_71 dim 0 : vector<8x32xf32>, i32 -> vector<8x32xf32>
    %177 = vector.extract_strided_slice %134 {offsets = [0, 1], sizes = [8, 1], strides = [1, 1]} : vector<8x4xf32> to vector<8x1xf32>
    %178 = vector.broadcast %177 : vector<8x1xf32> to vector<8x32xf32>
    %179 = arith.mulf %178, %176 : vector<8x32xf32>
    %180 = arith.addf %175, %179 : vector<8x32xf32>
    %c6_i32_72 = arith.constant 6 : i32
    %181 = tpu.dynamic_rotate %172 by %c6_i32_72 dim 0 : vector<8x32xf32>, i32 -> vector<8x32xf32>
    %182 = vector.extract_strided_slice %134 {offsets = [0, 2], sizes = [8, 1], strides = [1, 1]} : vector<8x4xf32> to vector<8x1xf32>
    %183 = vector.broadcast %182 : vector<8x1xf32> to vector<8x32xf32>
    %184 = arith.mulf %183, %181 : vector<8x32xf32>
    %185 = arith.addf %180, %184 : vector<8x32xf32>
    %c4_i32_73 = arith.constant 4 : i32
    %186 = tpu.dynamic_rotate %172 by %c4_i32_73 dim 0 : vector<8x32xf32>, i32 -> vector<8x32xf32>
    %187 = vector.extract_strided_slice %134 {offsets = [0, 3], sizes = [8, 1], strides = [1, 1]} : vector<8x4xf32> to vector<8x1xf32>
    %188 = vector.broadcast %187 : vector<8x1xf32> to vector<8x32xf32>
    %189 = arith.mulf %188, %186 : vector<8x32xf32>
    %190 = arith.addf %185, %189 : vector<8x32xf32>
    %191 = arith.addf %190, %172 : vector<8x32xf32>
    %c0_74 = arith.constant 0 : index
    %c0_75 = arith.constant 0 : index
    %c0_76 = arith.constant 0 : index
    %192 = vector.load %arg11[%c0_74, %c0_75, %c0_76] : memref<1x8x32xf32, #tpu.memory_space<vmem>>, vector<1x8x32xf32>
    %193 = vector.shape_cast %192 : vector<1x8x32xf32> to vector<8x32xf32>
    %194 = vector.shape_cast %191 : vector<8x32xf32> to vector<1x8x32xf32>
    tpu.vector_store %arg11[%c0_74, %c0_75, %c0_76], %194 {strides = array<i32>} : memref<1x8x32xf32, #tpu.memory_space<vmem>>, vector<1x8x32xf32>,
    return
  }
  func.func @transform_0(%arg0: i32) -> (i32, i32, i32) {
    %c0_i32 = arith.constant 0 : i32
    %c0_i32_0 = arith.constant 0 : i32
    %c0_i32_1 = arith.constant 0 : i32
    return %arg0, %c0_i32, %c0_i32_0 : i32, i32, i32
  }
  func.func @transform_1(%arg0: i32) -> (i32, i32, i32) {
    %c0_i32 = arith.constant 0 : i32
    %c0_i32_0 = arith.constant 0 : i32
    %c0_i32_1 = arith.constant 0 : i32
    return %arg0, %c0_i32, %c0_i32_0 : i32, i32, i32
  }
  func.func @transform_2(%arg0: i32) -> (i32, i32) {
    %c0_i32 = arith.constant 0 : i32
    %c0_i32_0 = arith.constant 0 : i32
    %c0_i32_1 = arith.constant 0 : i32
    return %c0_i32, %c0_i32_0 : i32, i32
  }
  func.func @transform_3(%arg0: i32) -> (i32, i32) {
    %c0_i32 = arith.constant 0 : i32
    %c0_i32_0 = arith.constant 0 : i32
    %c0_i32_1 = arith.constant 0 : i32
    return %c0_i32, %c0_i32_0 : i32, i32
  }
  func.func @transform_4(%arg0: i32) -> (i32, i32) {
    %c0_i32 = arith.constant 0 : i32
    %c0_i32_0 = arith.constant 0 : i32
    %c0_i32_1 = arith.constant 0 : i32
    return %c0_i32, %c0_i32_0 : i32, i32
  }
  func.func @transform_5(%arg0: i32) -> (i32, i32) {
    %c0_i32 = arith.constant 0 : i32
    %c0_i32_0 = arith.constant 0 : i32
    %c0_i32_1 = arith.constant 0 : i32
    return %c0_i32, %c0_i32_0 : i32, i32
  }
  func.func @transform_6(%arg0: i32) -> (i32, i32) {
    %c0_i32 = arith.constant 0 : i32
    %c0_i32_0 = arith.constant 0 : i32
    %c0_i32_1 = arith.constant 0 : i32
    return %c0_i32, %c0_i32_0 : i32, i32
  }
  func.func @transform_7(%arg0: i32) -> (i32, i32) {
    %c0_i32 = arith.constant 0 : i32
    %c0_i32_0 = arith.constant 0 : i32
    %c0_i32_1 = arith.constant 0 : i32
    return %c0_i32, %c0_i32_0 : i32, i32
  }
  func.func @transform_8(%arg0: i32) -> (i32, i32, i32) {
    %c0_i32 = arith.constant 0 : i32
    %c0_i32_0 = arith.constant 0 : i32
    %c0_i32_1 = arith.constant 0 : i32
    %c0_i32_2 = arith.constant 0 : i32
    return %c0_i32, %c0_i32_0, %c0_i32_1 : i32, i32, i32
  }
  func.func @transform_9(%arg0: i32) -> (i32, i32, i32) {
    %c0_i32 = arith.constant 0 : i32
    %c0_i32_0 = arith.constant 0 : i32
    %c0_i32_1 = arith.constant 0 : i32
    %c0_i32_2 = arith.constant 0 : i32
    return %c0_i32, %c0_i32_0, %c0_i32_1 : i32, i32, i32
  }
  func.func @transform_10(%arg0: i32) -> (i32, i32, i32) {
    %c0_i32 = arith.constant 0 : i32
    %c0_i32_0 = arith.constant 0 : i32
    %c0_i32_1 = arith.constant 0 : i32
    return %arg0, %c0_i32, %c0_i32_0 : i32, i32, i32
  }
}

</mosaic_0001>

<llo_original>
// kernel: tpu_custom_call.1
$region0: #{tpu_custom_call.1}
  #allocation0 [shape = 'u32[]', space=smem, size = 0x4, offset = 0x4, fixed_abs, tag = 'smem constant byte address 0x4 - core index']
  #allocation1 [shape = 'u32[144,128]{1,0:T(1,128)}', space=vmem, size = 0x12000, scoped, tag = 'internal scratch']
  %s0 = inlined_call_operand.hbm [shape: f32[2,8,32], index: 0, kind: input, shape index: {}]
  %s1 = inlined_call_operand.hbm [shape: f32[2,8,32], index: 1, kind: input, shape index: {}]
  %s2 = inlined_call_operand.vmem [shape: f32[32,32], index: 2, kind: input, shape index: {}]
  %s3 = inlined_call_operand.vmem [shape: f32[1,32], index: 3, kind: input, shape index: {}]
  %s4 = inlined_call_operand.vmem [shape: f32[32,32], index: 4, kind: input, shape index: {}]
  %s5 = inlined_call_operand.vmem [shape: f32[1,32], index: 5, kind: input, shape index: {}]
  %s6 = inlined_call_operand.vmem [shape: f32[32,96], index: 6, kind: input, shape index: {}]
  %s7 = inlined_call_operand.vmem [shape: f32[1,96], index: 7, kind: input, shape index: {}]
  %s8 = inlined_call_operand.vmem [shape: f32[3,32,4], index: 8, kind: input, shape index: {}]
  %s9 = inlined_call_operand.vmem [shape: f32[3,1,4], index: 9, kind: input, shape index: {}]
  %s10 = inlined_call_operand.hbm [shape: f32[2,8,32], index: 10, kind: output, shape index: {}]
  %s11 = sld [smem:[#allocation0]]
  $region81: #{tpu_custom_call.1} parent=0
    _
  %s13 = ssub.s32 1, %s11
  %s14 = scalar_select 0, %s13, %s11
  $region1: #{tpu_custom_call.1} parent=0
    #allocation2 [shape = 'u8[8192]{0}', space=vmem, size = 0x2000, scoped, tag = 'input window, operand 0']
    #allocation3 [shape = 's32[2]{0}', space=sflag, size = 0x8, scoped, tag = 'scoped memory for tpu_custom_call.1']
    #allocation4 [shape = 's32[2]{0}', space=sflag, size = 0x8, scoped, tag = 'scoped memory for tpu_custom_call.1']
    #allocation5 [shape = 'u8[8192]{0}', space=vmem, size = 0x2000, scoped, tag = 'input window, operand 1']
    #allocation6 [shape = 's32[2]{0}', space=sflag, size = 0x8, scoped, tag = 'scoped memory for tpu_custom_call.1']
    #allocation7 [shape = 'u8[8192]{0}', space=vmem, size = 0x2000, scoped, tag = 'output window, operand 0']
    %15 = vsyncpa [#allocation3], 0
    %s16 = scalar_lea.sflag [#allocation3], 1
    %17 = vsyncpa %s16, 0
    %18 = vsyncpa [#allocation6], 0
    %s19 = scalar_lea.sflag [#allocation6], 1
    %20 = vsyncpa %s19, 0
    %21 = vsyncpa [#allocation4], 0
    %s22 = scalar_lea.sflag [#allocation4], 1
    %23 = vsyncpa %s22, 0
    loop: start=0, step=1, limit=4
    $region2: #{tpu_custom_call.1} parent=1 // loop_pre_header
      _
    $region3: #{tpu_custom_call.1} parent=1 // loop_header
      %s25 = sphi 0, %s29
      %p26 = scmp.ge.s32.totalorder %s25, 4
      %s35 = sphi 0, %s37
      %s38 = sphi 0, %s35
      %s39 = sphi 0, %s38
      %s55 = sphi 0, %s39
      %s61 = sphi 0, %s63
      %s64 = sphi 0, %s61
      %s65 = sphi 0, %s64
      %s81 = sphi 0, %s65
      %s85 = sphi 0, %s85
      %s87 = sphi 0, %s85
      %s88 = sphi 0, %s87
      %s102 = sphi 0, %s88
      %s106 = sphi 0, %s106
      %s108 = sphi 0, %s106
      %s109 = sphi 0, %s108
      %s123 = sphi 0, %s109
      %s127 = sphi 0, %s127
      %s129 = sphi 0, %s127
      %s130 = sphi 0, %s129
      %s144 = sphi 0, %s130
      %s148 = sphi 0, %s148
      %s150 = sphi 0, %s148
      %s151 = sphi 0, %s150
      %s165 = sphi 0, %s151
      %s169 = sphi 0, %s169
      %s171 = sphi 0, %s169
      %s172 = sphi 0, %s171
      %s186 = sphi 0, %s172
      %s190 = sphi 0, %s190
      %s192 = sphi 0, %s190
      %s193 = sphi 0, %s192
      %s207 = sphi 0, %s193
      %s211 = sphi 0, %s211
      %s213 = sphi 0, %s211
      %s214 = sphi 0, %s213
      %s228 = sphi 0, %s214
      %s232 = sphi 0, %s232
      %s234 = sphi 0, %s232
      %s235 = sphi 0, %s234
      %s249 = sphi 0, %s235
      %s255 = sphi 0, %s257
      %s258 = sphi 0, %s255
      %s259 = sphi 0, %s258
      %s275 = sphi 0, %s259
    $region4: #{tpu_custom_call.1} parent=1 // loop_header_branch
      %28 = sbr.rel (%p26) target = $region8
    $region5: #{tpu_custom_call.1} parent=1 // loop_body
      %s30 = ssub.s32 %s25, 1
      %s31 = ssub.s32 %s25, 2
      %s32 = sadd.s32 %s25, 1
      %s33 = ssub.s32 %s25, %s32
      %p34 = scmp.eq.s32.totalorder %s33, 0
      %s36 = sadd.s32 %s35, 1
      %s37 = scalar_select %p34, %s35, %s36
      %p40 = pneg %p34
      %p41 = scmp.eq.s32.totalorder %s25, 1
      %p42 = por %p40, %p41
      %p43 = scmp.ne.s32.totalorder %s35, %s38
      %p44 = scmp.eq.s32.totalorder %s25, 0
      %p45 = por %p43, %p44
      %p46 = scmp.ne.s32.totalorder %s35, %s38
      %p47 = scmp.eq.s32.totalorder %s30, 1
      %p48 = por %p46, %p47
      %p49 = scmp.ne.s32.totalorder %s38, %s39
      %p50 = scmp.eq.s32.totalorder %s30, 0
      %p51 = por %p49, %p50
      %p52 = scmp.ne.s32.totalorder %s38, %s39
      %p53 = scmp.eq.s32.totalorder %s31, 1
      %p54 = por %p52, %p53
      %p56 = scmp.ne.s32.totalorder %s39, %s55
      %p57 = scmp.eq.s32.totalorder %s31, 0
      %p58 = por %p56, %p57
      %s59 = ssub.s32 %s25, %s32
      %p60 = scmp.eq.s32.totalorder %s59, 0
      %s62 = sadd.s32 %s61, 1
      %s63 = scalar_select %p60, %s61, %s62
      %p66 = pneg %p60
      %p67 = scmp.eq.s32.totalorder %s25, 1
      %p68 = por %p66, %p67
      %p69 = scmp.ne.s32.totalorder %s61, %s64
      %p70 = scmp.eq.s32.totalorder %s25, 0
      %p71 = por %p69, %p70
      %p72 = scmp.ne.s32.totalorder %s61, %s64
      %p73 = scmp.eq.s32.totalorder %s30, 1
      %p74 = por %p72, %p73
      %p75 = scmp.ne.s32.totalorder %s64, %s65
      %p76 = scmp.eq.s32.totalorder %s30, 0
      %p77 = por %p75, %p76
      %p78 = scmp.ne.s32.totalorder %s64, %s65
      %p79 = scmp.eq.s32.totalorder %s31, 1
      %p80 = por %p78, %p79
      %p82 = scmp.ne.s32.totalorder %s65, %s81
      %p83 = scmp.eq.s32.totalorder %s31, 0
      %p84 = por %p82, %p83
      %s86 = sadd.s32 %s85, 1
      %p89 = scmp.eq.s32.totalorder %s25, 1
      %p90 = scmp.ne.s32.totalorder %s85, %s87
      %p91 = scmp.eq.s32.totalorder %s25, 0
      %p92 = por %p90, %p91
      %p93 = scmp.ne.s32.totalorder %s85, %s87
      %p94 = scmp.eq.s32.totalorder %s30, 1
      %p95 = por %p93, %p94
      %p96 = scmp.ne.s32.totalorder %s87, %s88
      %p97 = scmp.eq.s32.totalorder %s30, 0
      %p98 = por %p96, %p97
      %p99 = scmp.ne.s32.totalorder %s87, %s88
      %p100 = scmp.eq.s32.totalorder %s31, 1
      %p101 = por %p99, %p100
      %p103 = scmp.ne.s32.totalorder %s88, %s102
      %p104 = scmp.eq.s32.totalorder %s31, 0
      %p105 = por %p103, %p104
      %s107 = sadd.s32 %s106, 1
      %p110 = scmp.eq.s32.totalorder %s25, 1
      %p111 = scmp.ne.s32.totalorder %s106, %s108
      %p112 = scmp.eq.s32.totalorder %s25, 0
      %p113 = por %p111, %p112
      %p114 = scmp.ne.s32.totalorder %s106, %s108
      %p115 = scmp.eq.s32.totalorder %s30, 1
      %p116 = por %p114, %p115
      %p117 = scmp.ne.s32.totalorder %s108, %s109
      %p118 = scmp.eq.s32.totalorder %s30, 0
      %p119 = por %p117, %p118
      %p120 = scmp.ne.s32.totalorder %s108, %s109
      %p121 = scmp.eq.s32.totalorder %s31, 1
      %p122 = por %p120, %p121
      %p124 = scmp.ne.s32.totalorder %s109, %s123
      %p125 = scmp.eq.s32.totalorder %s31, 0
      %p126 = por %p124, %p125
      %s128 = sadd.s32 %s127, 1
      %p131 = scmp.eq.s32.totalorder %s25, 1
      %p132 = scmp.ne.s32.totalorder %s127, %s129
      %p133 = scmp.eq.s32.totalorder %s25, 0
      %p134 = por %p132, %p133
      %p135 = scmp.ne.s32.totalorder %s127, %s129
      %p136 = scmp.eq.s32.totalorder %s30, 1
      %p137 = por %p135, %p136
      %p138 = scmp.ne.s32.totalorder %s129, %s130
      %p139 = scmp.eq.s32.totalorder %s30, 0
      %p140 = por %p138, %p139
      %p141 = scmp.ne.s32.totalorder %s129, %s130
      %p142 = scmp.eq.s32.totalorder %s31, 1
      %p143 = por %p141, %p142
      %p145 = scmp.ne.s32.totalorder %s130, %s144
      %p146 = scmp.eq.s32.totalorder %s31, 0
      %p147 = por %p145, %p146
      %s149 = sadd.s32 %s148, 1
      %p152 = scmp.eq.s32.totalorder %s25, 1
      %p153 = scmp.ne.s32.totalorder %s148, %s150
      %p154 = scmp.eq.s32.totalorder %s25, 0
      %p155 = por %p153, %p154
      %p156 = scmp.ne.s32.totalorder %s148, %s150
      %p157 = scmp.eq.s32.totalorder %s30, 1
      %p158 = por %p156, %p157
      %p159 = scmp.ne.s32.totalorder %s150, %s151
      %p160 = scmp.eq.s32.totalorder %s30, 0
      %p161 = por %p159, %p160
      %p162 = scmp.ne.s32.totalorder %s150, %s151
      %p163 = scmp.eq.s32.totalorder %s31, 1
      %p164 = por %p162, %p163
      %p166 = scmp.ne.s32.totalorder %s151, %s165
      %p167 = scmp.eq.s32.totalorder %s31, 0
      %p168 = por %p166, %p167
      %s170 = sadd.s32 %s169, 1
      %p173 = scmp.eq.s32.totalorder %s25, 1
      %p174 = scmp.ne.s32.totalorder %s169, %s171
      %p175 = scmp.eq.s32.totalorder %s25, 0
      %p176 = por %p174, %p175
      %p177 = scmp.ne.s32.totalorder %s169, %s171
      %p178 = scmp.eq.s32.totalorder %s30, 1
      %p179 = por %p177, %p178
      %p180 = scmp.ne.s32.totalorder %s171, %s172
      %p181 = scmp.eq.s32.totalorder %s30, 0
      %p182 = por %p180, %p181
      %p183 = scmp.ne.s32.totalorder %s171, %s172
      %p184 = scmp.eq.s32.totalorder %s31, 1
      %p185 = por %p183, %p184
      %p187 = scmp.ne.s32.totalorder %s172, %s186
      %p188 = scmp.eq.s32.totalorder %s31, 0
      %p189 = por %p187, %p188
      %s191 = sadd.s32 %s190, 1
      %p194 = scmp.eq.s32.totalorder %s25, 1
      %p195 = scmp.ne.s32.totalorder %s190, %s192
      %p196 = scmp.eq.s32.totalorder %s25, 0
      %p197 = por %p195, %p196
      %p198 = scmp.ne.s32.totalorder %s190, %s192
      %p199 = scmp.eq.s32.totalorder %s30, 1
      %p200 = por %p198, %p199
      %p201 = scmp.ne.s32.totalorder %s192, %s193
      %p202 = scmp.eq.s32.totalorder %s30, 0
      %p203 = por %p201, %p202
      %p204 = scmp.ne.s32.totalorder %s192, %s193
      %p205 = scmp.eq.s32.totalorder %s31, 1
      %p206 = por %p204, %p205
      %p208 = scmp.ne.s32.totalorder %s193, %s207
      %p209 = scmp.eq.s32.totalorder %s31, 0
      %p210 = por %p208, %p209
      %s212 = sadd.s32 %s211, 1
      %p215 = scmp.eq.s32.totalorder %s25, 1
      %p216 = scmp.ne.s32.totalorder %s211, %s213
      %p217 = scmp.eq.s32.totalorder %s25, 0
      %p218 = por %p216, %p217
      %p219 = scmp.ne.s32.totalorder %s211, %s213
      %p220 = scmp.eq.s32.totalorder %s30, 1
      %p221 = por %p219, %p220
      %p222 = scmp.ne.s32.totalorder %s213, %s214
      %p223 = scmp.eq.s32.totalorder %s30, 0
      %p224 = por %p222, %p223
      %p225 = scmp.ne.s32.totalorder %s213, %s214
      %p226 = scmp.eq.s32.totalorder %s31, 1
      %p227 = por %p225, %p226
      %p229 = scmp.ne.s32.totalorder %s214, %s228
      %p230 = scmp.eq.s32.totalorder %s31, 0
      %p231 = por %p229, %p230
      %s233 = sadd.s32 %s232, 1
      %p236 = scmp.eq.s32.totalorder %s25, 1
      %p237 = scmp.ne.s32.totalorder %s232, %s234
      %p238 = scmp.eq.s32.totalorder %s25, 0
      %p239 = por %p237, %p238
      %p240 = scmp.ne.s32.totalorder %s232, %s234
      %p241 = scmp.eq.s32.totalorder %s30, 1
      %p242 = por %p240, %p241
      %p243 = scmp.ne.s32.totalorder %s234, %s235
      %p244 = scmp.eq.s32.totalorder %s30, 0
      %p245 = por %p243, %p244
      %p246 = scmp.ne.s32.totalorder %s234, %s235
      %p247 = scmp.eq.s32.totalorder %s31, 1
      %p248 = por %p246, %p247
      %p250 = scmp.ne.s32.totalorder %s235, %s249
      %p251 = scmp.eq.s32.totalorder %s31, 0
      %p252 = por %p250, %p251
      %s253 = ssub.s32 %s25, %s32
      %p254 = scmp.eq.s32.totalorder %s253, 0
      %s256 = sadd.s32 %s255, 1
      %s257 = scalar_select %p254, %s255, %s256
      %p260 = pneg %p254
      %p261 = scmp.eq.s32.totalorder %s25, 1
      %p262 = por %p260, %p261
      %p263 = scmp.ne.s32.totalorder %s255, %s258
      %p264 = scmp.eq.s32.totalorder %s25, 0
      %p265 = por %p263, %p264
      %p266 = scmp.ne.s32.totalorder %s255, %s258
      %p267 = scmp.eq.s32.totalorder %s30, 1
      %p268 = por %p266, %p267
      %p269 = scmp.ne.s32.totalorder %s258, %s259
      %p270 = scmp.eq.s32.totalorder %s30, 0
      %p271 = por %p269, %p270
      %p272 = scmp.ne.s32.totalorder %s258, %s259
      %p273 = scmp.eq.s32.totalorder %s31, 1
      %p274 = por %p272, %p273
      %p276 = scmp.ne.s32.totalorder %s259, %s275
      %p277 = scmp.eq.s32.totalorder %s31, 0
      %p278 = por %p276, %p277
      %p279 = scmp.le.s32.totalorder 1, %s25
      %p280 = scmp.lt.s32.totalorder %s25, 3
      %p281 = pnand %p279, %p280
      %p282 = pneg %p281
      // Predicated region
      $region9: #{tpu_custom_call.1} parent=5 // pred_check
        _
      $region10: #{tpu_custom_call.1} parent=5 // pred_check_branch
        %284 = sbr.rel (%p281) target = $region12
      $region11: #{tpu_custom_call.1} parent=5 // pred_region
        %s285 = ssub.s32 %s25, 1
        // Predicated region
        $region13: #{tpu_custom_call.1} parent=11 // pred_check
          %p286 = pneg %p98
        $region14: #{tpu_custom_call.1} parent=11 // pred_check_branch
          %288 = sbr.rel (%p286) target = $region16
        $region15: #{tpu_custom_call.1} parent=11 // pred_region
          _
        $region16: #{tpu_custom_call.1} parent=11 // pred_fallthru
          _
        // Predicated region
        $region17: #{tpu_custom_call.1} parent=11 // pred_check
          %p289 = pneg %p119
        $region18: #{tpu_custom_call.1} parent=11 // pred_check_branch
          %291 = sbr.rel (%p289) target = $region20
        $region19: #{tpu_custom_call.1} parent=11 // pred_region
          _
        $region20: #{tpu_custom_call.1} parent=11 // pred_fallthru
          _
        // Predicated region
        $region21: #{tpu_custom_call.1} parent=11 // pred_check
          %p292 = pneg %p140
        $region22: #{tpu_custom_call.1} parent=11 // pred_check_branch
          %294 = sbr.rel (%p292) target = $region24
        $region23: #{tpu_custom_call.1} parent=11 // pred_region
          _
        $region24: #{tpu_custom_call.1} parent=11 // pred_fallthru
          _
        // Predicated region
        $region25: #{tpu_custom_call.1} parent=11 // pred_check
          %p295 = pneg %p161
        $region26: #{tpu_custom_call.1} parent=11 // pred_check_branch
          %297 = sbr.rel (%p295) target = $region28
        $region27: #{tpu_custom_call.1} parent=11 // pred_region
          _
        $region28: #{tpu_custom_call.1} parent=11 // pred_fallthru
          _
        // Predicated region
        $region29: #{tpu_custom_call.1} parent=11 // pred_check
          %p298 = pneg %p182
        $region30: #{tpu_custom_call.1} parent=11 // pred_check_branch
          %300 = sbr.rel (%p298) target = $region32
        $region31: #{tpu_custom_call.1} parent=11 // pred_region
          _
        $region32: #{tpu_custom_call.1} parent=11 // pred_fallthru
          _
        // Predicated region
        $region33: #{tpu_custom_call.1} parent=11 // pred_check
          %p301 = pneg %p203
        $region34: #{tpu_custom_call.1} parent=11 // pred_check_branch
          %303 = sbr.rel (%p301) target = $region36
        $region35: #{tpu_custom_call.1} parent=11 // pred_region
          _
        $region36: #{tpu_custom_call.1} parent=11 // pred_fallthru
          _
        // Predicated region
        $region37: #{tpu_custom_call.1} parent=11 // pred_check
          %p304 = pneg %p224
        $region38: #{tpu_custom_call.1} parent=11 // pred_check_branch
          %306 = sbr.rel (%p304) target = $region40
        $region39: #{tpu_custom_call.1} parent=11 // pred_region
          _
        $region40: #{tpu_custom_call.1} parent=11 // pred_fallthru
          _
        // Predicated region
        $region41: #{tpu_custom_call.1} parent=11 // pred_check
          %p307 = pneg %p245
        $region42: #{tpu_custom_call.1} parent=11 // pred_check_branch
          %309 = sbr.rel (%p307) target = $region44
        $region43: #{tpu_custom_call.1} parent=11 // pred_region
          _
        $region44: #{tpu_custom_call.1} parent=11 // pred_fallthru
          _
      $region12: #{tpu_custom_call.1} parent=5 // pred_fallthru
        _
      %p310 = scmp.lt.s32.totalorder %s25, 2
      // Predicated region
      $region45: #{tpu_custom_call.1} parent=5 // pred_check
        %p311 = pneg %p310
      $region46: #{tpu_custom_call.1} parent=5 // pred_check_branch
        %313 = sbr.rel (%p311) target = $region48
      $region47: #{tpu_custom_call.1} parent=5 // pred_region
        // Predicated region
        $region49: #{tpu_custom_call.1} parent=47 // pred_check
          %p314 = pneg %p45
        $region50: #{tpu_custom_call.1} parent=47 // pred_check_branch
          %316 = sbr.rel (%p314) target = $region52
        $region51: #{tpu_custom_call.1} parent=47 // pred_region
          %s317 = sand.u32 %s35, 1
          %s318 = scalar_lea.sflag [#allocation3], %s317
          %s319 = sand.u32 %s35, 1
          %s320 = smul.addr %s319, 8
          %s321 = scalar_lea.vmem [#allocation2], %s320
          %s323 = ssub.s32 128, 128
          %324 = vsyncadd %s318, %s323
          %s325 = smul.addr %s25, 128
          %s326 = scalar_lea.hbm %s0, %s325
          %s328 = sshll.u32 %s321, 4
          %s329 = int_to_ptr.vmem [resolvable:$true] %s328
          %331 = dma.hbm_to_vmem [thread:$0]  %s326, 128, %s329, %s318
        $region52: #{tpu_custom_call.1} parent=47 // pred_fallthru
          _
        // Predicated region
        $region53: #{tpu_custom_call.1} parent=47 // pred_check
          %p332 = pneg %p71
        $region54: #{tpu_custom_call.1} parent=47 // pred_check_branch
          %334 = sbr.rel (%p332) target = $region56
        $region55: #{tpu_custom_call.1} parent=47 // pred_region
          %s335 = sand.u32 %s61, 1
          %s336 = scalar_lea.sflag [#allocation6], %s335
          %s337 = sand.u32 %s61, 1
          %s338 = smul.addr %s337, 8
          %s339 = scalar_lea.vmem [#allocation5], %s338
          %s341 = ssub.s32 128, 128
          %342 = vsyncadd %s336, %s341
          %s343 = smul.addr %s25, 128
          %s344 = scalar_lea.hbm %s1, %s343
          %s346 = sshll.u32 %s339, 4
          %s347 = int_to_ptr.vmem [resolvable:$true] %s346
          %349 = dma.hbm_to_vmem [thread:$0]  %s344, 128, %s347, %s336
        $region56: #{tpu_custom_call.1} parent=47 // pred_fallthru
          _
      $region48: #{tpu_custom_call.1} parent=5 // pred_fallthru
        _
      %p350 = scmp.le.s32.totalorder 1, %s25
      %p351 = scmp.lt.s32.totalorder %s25, 3
      %p352 = pnand %p350, %p351
      %p353 = pneg %p352
      // Predicated region
      $region57: #{tpu_custom_call.1} parent=5 // pred_check
        _
      $region58: #{tpu_custom_call.1} parent=5 // pred_check_branch
        %355 = sbr.rel (%p352) target = $region60
      $region59: #{tpu_custom_call.1} parent=5 // pred_region
        %s356 = ssub.s32 %s25, 1
        %s357 = sand.u32 %s38, 1
        %s358 = scalar_lea.sflag [#allocation3], %s357
        %s359 = sand.u32 %s38, 1
        %s360 = smul.addr %s359, 8
        %s361 = scalar_lea.vmem [#allocation2], %s360
        // Predicated region
        $region61: #{tpu_custom_call.1} parent=59 // pred_check
          %p362 = pneg %p51
        $region62: #{tpu_custom_call.1} parent=59 // pred_check_branch
          %364 = sbr.rel (%p362) target = $region64
        $region63: #{tpu_custom_call.1} parent=59 // pred_region
          %365 = dma.done %s358, 128
        $region64: #{tpu_custom_call.1} parent=59 // pred_fallthru
          _
        %s366 = sand.u32 %s64, 1
        %s367 = scalar_lea.sflag [#allocation6], %s366
        %s368 = sand.u32 %s64, 1
        %s369 = smul.addr %s368, 8
        %s370 = scalar_lea.vmem [#allocation5], %s369
        // Predicated region
        $region65: #{tpu_custom_call.1} parent=59 // pred_check
          %p371 = pneg %p77
        $region66: #{tpu_custom_call.1} parent=59 // pred_check_branch
          %373 = sbr.rel (%p371) target = $region68
        $region67: #{tpu_custom_call.1} parent=59 // pred_region
          %374 = dma.done %s367, 128
        $region68: #{tpu_custom_call.1} parent=59 // pred_fallthru
          _
        %s375 = sand.u32 %s38, 1
        %s376 = scalar_lea.sflag [#allocation3], %s375
        %s377 = sand.u32 %s38, 1
        %s378 = smul.addr %s377, 8
        %s379 = scalar_lea.vmem [#allocation2], %s378
        %p380 = pneg %p51
        %p381 = pneg %p48
        %s382 = sand.u32 %s64, 1
        %s383 = scalar_lea.sflag [#allocation6], %s382
        %s384 = sand.u32 %s64, 1
        %s385 = smul.addr %s384, 8
        %s386 = scalar_lea.vmem [#allocation5], %s385
        %p387 = pneg %p77
        %p388 = pneg %p74
        %p389 = pneg %p98
        %p390 = pneg %p95
        %p391 = pneg %p119
        %p392 = pneg %p116
        %p393 = pneg %p140
        %p394 = pneg %p137
        %p395 = pneg %p161
        %p396 = pneg %p158
        %p397 = pneg %p182
        %p398 = pneg %p179
        %p399 = pneg %p203
        %p400 = pneg %p200
        %p401 = pneg %p224
        %p402 = pneg %p221
        %p403 = pneg %p245
        %p404 = pneg %p242
        %p405 = pneg %p271
        %p406 = pneg %p268
        %s407 = sand.u32 %s258, 1
        %s408 = scalar_lea.sflag [#allocation4], %s407
        %s409 = sand.u32 %s258, 1
        %s410 = smul.addr %s409, 8
        %s411 = scalar_lea.vmem [#allocation7], %s410
        %v413 = vld [vmem:[%s361] sm:$0xff]
        %v414 = vld [vmem:[%s370] sm:$0xff]
        %v415 = vpack.c.bf16 %v413, %v413
        %v416 = vld [vmem:[%s2] sm:$0xff]
        %v417 = vld [vmem:[%s2 + $0x8] sm:$0xff]
        %v418 = vld [vmem:[%s2 + $0x10] sm:$0xff]
        %v419 = vld [vmem:[%s2 + $0x18] sm:$0xff]
        %v420 = vpack.c.bf16 %v417, %v416
        %v421 = vpack.c.bf16 %v419, %v418
        %v422 = vld [vmem:[%s3] sm:$0x1]
        %v424 = vlaneseq
        %v425 = vshrl.u32 %v424, 7
        %v426 = vsub.s32 0, %v425
        %v427 = vrot.slane %v422, %v426
        %vm429 = vcmask 261120
        %v431 = vsel %vm429, %v415, 0
        %433 = vmatprep.subr.bf16.mxu0 0
        %434 = vmatpush1.bf16.msra.mxu0 %v420
        %435 = vmatprep.subr.bf16.mxu0 0
        %436 = vmatpush1.bf16.msra.mxu0 %v421
        %437 = vmatprep.subr.bf16.mxu0 0
        %438 = vmatpush1.bf16.msra.mxu0 0
        %439 = vmatprep.subr.bf16.mxu0 0
        %440 = vmatpush1.bf16.msra.mxu0 0
        %441 = vmatprep.subr.bf16.mxu0 0
        %442 = vmatpush1.bf16.msra.mxu0 0
        %443 = vmatprep.subr.bf16.mxu0 0
        %444 = vmatpush1.bf16.msra.mxu0 0
        %445 = vmatprep.subr.bf16.mxu0 0
        %446 = vmatpush1.bf16.msra.mxu0 0
        %447 = vmatprep.subr.bf16.mxu0 0
        %448 = vmatpush1.bf16.msra.mxu0 0
        %449 = vmatprep.subr.bf16.mxu0 0
        %450 = vmatpush1.bf16.msra.mxu0 0
        %451 = vmatprep.subr.bf16.mxu0 0
        %452 = vmatpush1.bf16.msra.mxu0 0
        %453 = vmatprep.subr.bf16.mxu0 0
        %454 = vmatpush1.bf16.msra.mxu0 0
        %455 = vmatprep.subr.bf16.mxu0 0
        %456 = vmatpush1.bf16.msra.mxu0 0
        %457 = vmatprep.subr.bf16.mxu0 0
        %458 = vmatpush1.bf16.msra.mxu0 0
        %459 = vmatprep.subr.bf16.mxu0 0
        %460 = vmatpush1.bf16.msra.mxu0 0
        %461 = vmatprep.subr.bf16.mxu0 0
        %462 = vmatpush1.bf16.msra.mxu0 0
        %463 = vmatprep.subr.bf16.mxu0 0
        %464 = vmatpush1.bf16.msra.mxu0 0
        %465 = vmatprep.mubr.bf16.mxu0 0
        %466 = vmatmul.mubr.bf16.gmra.mrb[0].mxu0 %v431
        %v467 = vpop.f32.mrb[0].mxu0
        %v468 = vadd.f32 %v427, %v467
        %v469 = vpop.f32.mrb[0].mxu0
        %v470 = vpop.f32.mrb[0].mxu0
        %v471 = vpop.f32.mrb[0].mxu0
        %472 = vdwg.mxu0
        %v473 = vmul.f32 %v468, 0.5
        %v474 = vmul.f32 %v468, 0.70710677
        %vm475 = vcmp.ge.f32.partialorder %v474, 0.0
        %v476 = vsel %vm475, 1.0, -1.0
        %v477 = vand.u32 2147483647, %v474
        %v478 = vmul.f32 %v477, 0.3275911
        %v479 = vadd.f32 %v478, 1.0
        %v480 = vrcp.pop %v479
        %v481 = vmul.f32 %v480, 1.0614054
        %v482 = vadd.f32 %v481, -1.4531521
        %v483 = vmul.f32 %v482, %v480
        %v484 = vadd.f32 %v483, 1.4214138
        %v485 = vmul.f32 %v484, %v480
        %v486 = vadd.f32 %v485, -0.28449672
        %v487 = vmul.f32 %v486, %v480
        %v488 = vadd.f32 %v487, 0.2548296
        %v489 = vmul.f32 %v488, %v480
        %v490 = vsub.f32 0.0, %v477
        %v491 = vmul.f32 %v490, %v477
        %v492 = vmul.f32 %v491, 1.442695
        %v493 = vpow.pop %v492
        %v494 = vmul.f32 %v489, %v493
        %v495 = vsub.f32 1.0, %v494
        %v496 = vmul.f32 %v476, %v495
        %v497 = vadd.f32 %v496, 1.0
        %v498 = vmul.f32 %v473, %v497
        %v499 = vpack.c.bf16 %v498, %v498
        %v500 = vld [vmem:[%s4] sm:$0xff]
        %v501 = vld [vmem:[%s4 + $0x8] sm:$0xff]
        %v502 = vld [vmem:[%s4 + $0x10] sm:$0xff]
        %v503 = vld [vmem:[%s4 + $0x18] sm:$0xff]
        %v504 = vpack.c.bf16 %v501, %v500
        %v505 = vpack.c.bf16 %v503, %v502
        %v506 = vld [vmem:[%s5] sm:$0x1]
        %v508 = vlaneseq
        %v509 = vshrl.u32 %v508, 7
        %v510 = vsub.s32 0, %v509
        %v511 = vrot.slane %v506, %v510
        %v514 = vsel %vm429, %v499, 0
        %516 = vmatprep.subr.bf16.mxu0 0
        %517 = vmatpush1.bf16.msra.mxu0 %v504
        %518 = vmatprep.subr.bf16.mxu0 0
        %519 = vmatpush1.bf16.msra.mxu0 %v505
        %520 = vmatprep.subr.bf16.mxu0 0
        %521 = vmatpush1.bf16.msra.mxu0 0
        %522 = vmatprep.subr.bf16.mxu0 0
        %523 = vmatpush1.bf16.msra.mxu0 0
        %524 = vmatprep.subr.bf16.mxu0 0
        %525 = vmatpush1.bf16.msra.mxu0 0
        %526 = vmatprep.subr.bf16.mxu0 0
        %527 = vmatpush1.bf16.msra.mxu0 0
        %528 = vmatprep.subr.bf16.mxu0 0
        %529 = vmatpush1.bf16.msra.mxu0 0
        %530 = vmatprep.subr.bf16.mxu0 0
        %531 = vmatpush1.bf16.msra.mxu0 0
        %532 = vmatprep.subr.bf16.mxu0 0
        %533 = vmatpush1.bf16.msra.mxu0 0
        %534 = vmatprep.subr.bf16.mxu0 0
        %535 = vmatpush1.bf16.msra.mxu0 0
        %536 = vmatprep.subr.bf16.mxu0 0
        %537 = vmatpush1.bf16.msra.mxu0 0
        %538 = vmatprep.subr.bf16.mxu0 0
        %539 = vmatpush1.bf16.msra.mxu0 0
        %540 = vmatprep.subr.bf16.mxu0 0
        %541 = vmatpush1.bf16.msra.mxu0 0
        %542 = vmatprep.subr.bf16.mxu0 0
        %543 = vmatpush1.bf16.msra.mxu0 0
        %544 = vmatprep.subr.bf16.mxu0 0
        %545 = vmatpush1.bf16.msra.mxu0 0
        %546 = vmatprep.subr.bf16.mxu0 0
        %547 = vmatpush1.bf16.msra.mxu0 0
        %548 = vmatprep.mubr.bf16.mxu0 0
        %549 = vmatmul.mubr.bf16.gmra.mrb[0].mxu0 %v514
        %v550 = vpop.f32.mrb[0].mxu0
        %v551 = vadd.f32 %v511, %v550
        %v552 = vpop.f32.mrb[0].mxu0
        %v553 = vpop.f32.mrb[0].mxu0
        %v554 = vpop.f32.mrb[0].mxu0
        %555 = vdwg.mxu0
        %v556 = vpack.c.bf16 %v414, %v414
        %v557 = vld [vmem:[%s6] sm:$0xff]
        %v558 = vld [vmem:[%s6 + $0x8] sm:$0xff]
        %v559 = vld [vmem:[%s6 + $0x10] sm:$0xff]
        %v560 = vld [vmem:[%s6 + $0x18] sm:$0xff]
        %v561 = vpack.c.bf16 %v558, %v557
        %v562 = vpack.c.bf16 %v560, %v559
        %v563 = vld [vmem:[%s7] sm:$0x1]
        %v565 = vlaneseq
        %v566 = vshrl.u32 %v565, 7
        %v567 = vsub.s32 0, %v566
        %v568 = vrot.slane %v563, %v567
        %v571 = vsel %vm429, %v556, 0
        %573 = vmatprep.subr.bf16.mxu0 0
        %574 = vmatpush1.bf16.msra.mxu0 %v561
        %575 = vmatprep.subr.bf16.mxu0 0
        %576 = vmatpush1.bf16.msra.mxu0 %v562
        %577 = vmatprep.subr.bf16.mxu0 0
        %578 = vmatpush1.bf16.msra.mxu0 0
        %579 = vmatprep.subr.bf16.mxu0 0
        %580 = vmatpush1.bf16.msra.mxu0 0
        %581 = vmatprep.subr.bf16.mxu0 0
        %582 = vmatpush1.bf16.msra.mxu0 0
        %583 = vmatprep.subr.bf16.mxu0 0
        %584 = vmatpush1.bf16.msra.mxu0 0
        %585 = vmatprep.subr.bf16.mxu0 0
        %586 = vmatpush1.bf16.msra.mxu0 0
        %587 = vmatprep.subr.bf16.mxu0 0
        %588 = vmatpush1.bf16.msra.mxu0 0
        %589 = vmatprep.subr.bf16.mxu0 0
        %590 = vmatpush1.bf16.msra.mxu0 0
        %591 = vmatprep.subr.bf16.mxu0 0
        %592 = vmatpush1.bf16.msra.mxu0 0
        %593 = vmatprep.subr.bf16.mxu0 0
        %594 = vmatpush1.bf16.msra.mxu0 0
        %595 = vmatprep.subr.bf16.mxu0 0
        %596 = vmatpush1.bf16.msra.mxu0 0
        %597 = vmatprep.subr.bf16.mxu0 0
        %598 = vmatpush1.bf16.msra.mxu0 0
        %599 = vmatprep.subr.bf16.mxu0 0
        %600 = vmatpush1.bf16.msra.mxu0 0
        %601 = vmatprep.subr.bf16.mxu0 0
        %602 = vmatpush1.bf16.msra.mxu0 0
        %603 = vmatprep.subr.bf16.mxu0 0
        %604 = vmatpush1.bf16.msra.mxu0 0
        %605 = vmatprep.mubr.bf16.mxu0 0
        %606 = vmatmul.mubr.bf16.gmra.mrb[0].mxu0 %v571
        %v607 = vpop.f32.mrb[0].mxu0
        %v608 = vadd.f32 %v568, %v607
        %v609 = vpop.f32.mrb[0].mxu0
        %v610 = vpop.f32.mrb[0].mxu0
        %v611 = vpop.f32.mrb[0].mxu0
        %612 = vdwg.mxu0
        %v613 = vmul.f32 %v608, 0.5
        %v614 = vmul.f32 %v608, 0.70710677
        %vm615 = vcmp.ge.f32.partialorder %v614, 0.0
        %v616 = vsel %vm615, 1.0, -1.0
        %v617 = vand.u32 2147483647, %v614
        %v618 = vmul.f32 %v617, 0.3275911
        %v619 = vadd.f32 %v618, 1.0
        %v620 = vrcp.pop %v619
        %v621 = vmul.f32 %v620, 1.0614054
        %v622 = vadd.f32 %v621, -1.4531521
        %v623 = vmul.f32 %v622, %v620
        %v624 = vadd.f32 %v623, 1.4214138
        %v625 = vmul.f32 %v624, %v620
        %v626 = vadd.f32 %v625, -0.28449672
        %v627 = vmul.f32 %v626, %v620
        %v628 = vadd.f32 %v627, 0.2548296
        %v629 = vmul.f32 %v628, %v620
        %v630 = vsub.f32 0.0, %v617
        %v631 = vmul.f32 %v630, %v617
        %v632 = vmul.f32 %v631, 1.442695
        %v633 = vpow.pop %v632
        %v634 = vmul.f32 %v629, %v633
        %v635 = vsub.f32 1.0, %v634
        %v636 = vmul.f32 %v616, %v635
        %v637 = vadd.f32 %v636, 1.0
        %v638 = vmul.f32 %v613, %v637
        %v639 = vpack.c.bf16 %v638, %v638
        %v640 = vld [vmem:[%s8] sm:$0xff]
        %v641 = vld [vmem:[%s8 + $0x8] sm:$0xff]
        %v642 = vld [vmem:[%s8 + $0x10] sm:$0xff]
        %v643 = vld [vmem:[%s8 + $0x18] sm:$0xff]
        %v644 = vpack.c.bf16 %v641, %v640
        %v645 = vpack.c.bf16 %v643, %v642
        %v646 = vld [vmem:[%s9] sm:$0x1]
        %v648 = vlaneseq
        %v649 = vshrl.u32 %v648, 7
        %v650 = vsub.s32 0, %v649
        %v651 = vrot.slane %v646, %v650
        %v654 = vsel %vm429, %v639, 0
        %656 = vmatprep.subr.bf16.mxu0 0
        %657 = vmatpush1.bf16.msra.mxu0 %v644
        %658 = vmatprep.subr.bf16.mxu0 0
        %659 = vmatpush1.bf16.msra.mxu0 %v645
        %660 = vmatprep.subr.bf16.mxu0 0
        %661 = vmatpush1.bf16.msra.mxu0 0
        %662 = vmatprep.subr.bf16.mxu0 0
        %663 = vmatpush1.bf16.msra.mxu0 0
        %664 = vmatprep.subr.bf16.mxu0 0
        %665 = vmatpush1.bf16.msra.mxu0 0
        %666 = vmatprep.subr.bf16.mxu0 0
        %667 = vmatpush1.bf16.msra.mxu0 0
        %668 = vmatprep.subr.bf16.mxu0 0
        %669 = vmatpush1.bf16.msra.mxu0 0
        %670 = vmatprep.subr.bf16.mxu0 0
        %671 = vmatpush1.bf16.msra.mxu0 0
        %672 = vmatprep.subr.bf16.mxu0 0
        %673 = vmatpush1.bf16.msra.mxu0 0
        %674 = vmatprep.subr.bf16.mxu0 0
        %675 = vmatpush1.bf16.msra.mxu0 0
        %676 = vmatprep.subr.bf16.mxu0 0
        %677 = vmatpush1.bf16.msra.mxu0 0
        %678 = vmatprep.subr.bf16.mxu0 0
        %679 = vmatpush1.bf16.msra.mxu0 0
        %680 = vmatprep.subr.bf16.mxu0 0
        %681 = vmatpush1.bf16.msra.mxu0 0
        %682 = vmatprep.subr.bf16.mxu0 0
        %683 = vmatpush1.bf16.msra.mxu0 0
        %684 = vmatprep.subr.bf16.mxu0 0
        %685 = vmatpush1.bf16.msra.mxu0 0
        %686 = vmatprep.subr.bf16.mxu0 0
        %687 = vmatpush1.bf16.msra.mxu0 0
        %688 = vmatprep.mubr.bf16.mxu0 0
        %689 = vmatmul.mubr.bf16.gmra.mrb[0].mxu0 %v654
        %v690 = vpop.f32.mrb[0].mxu0
        %v691 = vadd.f32 %v651, %v690
        %v692 = vpop.f32.mrb[0].mxu0
        %v693 = vpop.f32.mrb[0].mxu0
        %v694 = vpop.f32.mrb[0].mxu0
        %695 = vdwg.mxu0
        %s696 = scalar_lea.vmem %s8, 32
        %v697 = vld [vmem:[%s696] sm:$0xff]
        %v698 = vld [vmem:[%s696 + $0x8] sm:$0xff]
        %v699 = vld [vmem:[%s696 + $0x10] sm:$0xff]
        %v700 = vld [vmem:[%s696 + $0x18] sm:$0xff]
        %v701 = vpack.c.bf16 %v698, %v697
        %v702 = vpack.c.bf16 %v700, %v699
        %s703 = scalar_lea.vmem %s9, 1
        %v704 = vld [vmem:[%s703] sm:$0x1]
        %v706 = vlaneseq
        %v707 = vshrl.u32 %v706, 7
        %v708 = vsub.s32 0, %v707
        %v709 = vrot.slane %v704, %v708
        %712 = vrot.lane.b32.xlu0 %v639, 96
        %v713 = vpop.permute.xlu0 %712
        %v715 = vsel %vm429, %v713, 0
        %717 = vmatprep.subr.bf16.mxu0 0
        %718 = vmatpush1.bf16.msra.mxu0 %v701
        %719 = vmatprep.subr.bf16.mxu0 0
        %720 = vmatpush1.bf16.msra.mxu0 %v702
        %721 = vmatprep.subr.bf16.mxu0 0
        %722 = vmatpush1.bf16.msra.mxu0 0
        %723 = vmatprep.subr.bf16.mxu0 0
        %724 = vmatpush1.bf16.msra.mxu0 0
        %725 = vmatprep.subr.bf16.mxu0 0
        %726 = vmatpush1.bf16.msra.mxu0 0
        %727 = vmatprep.subr.bf16.mxu0 0
        %728 = vmatpush1.bf16.msra.mxu0 0
        %729 = vmatprep.subr.bf16.mxu0 0
        %730 = vmatpush1.bf16.msra.mxu0 0
        %731 = vmatprep.subr.bf16.mxu0 0
        %732 = vmatpush1.bf16.msra.mxu0 0
        %733 = vmatprep.subr.bf16.mxu0 0
        %734 = vmatpush1.bf16.msra.mxu0 0
        %735 = vmatprep.subr.bf16.mxu0 0
        %736 = vmatpush1.bf16.msra.mxu0 0
        %737 = vmatprep.subr.bf16.mxu0 0
        %738 = vmatpush1.bf16.msra.mxu0 0
        %739 = vmatprep.subr.bf16.mxu0 0
        %740 = vmatpush1.bf16.msra.mxu0 0
        %741 = vmatprep.subr.bf16.mxu0 0
        %742 = vmatpush1.bf16.msra.mxu0 0
        %743 = vmatprep.subr.bf16.mxu0 0
        %744 = vmatpush1.bf16.msra.mxu0 0
        %745 = vmatprep.subr.bf16.mxu0 0
        %746 = vmatpush1.bf16.msra.mxu0 0
        %747 = vmatprep.subr.bf16.mxu0 0
        %748 = vmatpush1.bf16.msra.mxu0 0
        %749 = vmatprep.mubr.bf16.mxu0 0
        %750 = vmatmul.mubr.bf16.gmra.mrb[0].mxu0 %v715
        %v751 = vpop.f32.mrb[0].mxu0
        %v752 = vadd.f32 %v709, %v751
        %v753 = vpop.f32.mrb[0].mxu0
        %v754 = vpop.f32.mrb[0].mxu0
        %v755 = vpop.f32.mrb[0].mxu0
        %756 = vdwg.mxu0
        %s757 = scalar_lea.vmem %s8, 64
        %v758 = vld [vmem:[%s757] sm:$0xff]
        %v759 = vld [vmem:[%s757 + $0x8] sm:$0xff]
        %v760 = vld [vmem:[%s757 + $0x10] sm:$0xff]
        %v761 = vld [vmem:[%s757 + $0x18] sm:$0xff]
        %v762 = vpack.c.bf16 %v759, %v758
        %v763 = vpack.c.bf16 %v761, %v760
        %s764 = scalar_lea.vmem %s9, 2
        %v765 = vld [vmem:[%s764] sm:$0x1]
        %v767 = vlaneseq
        %v768 = vshrl.u32 %v767, 7
        %v769 = vsub.s32 0, %v768
        %v770 = vrot.slane %v765, %v769
        %772 = vrot.lane.b32.xlu0 %v639, 64
        %v773 = vpop.permute.xlu0 %772
        %v775 = vsel %vm429, %v773, 0
        %777 = vmatprep.subr.bf16.mxu0 0
        %778 = vmatpush1.bf16.msra.mxu0 %v762
        %779 = vmatprep.subr.bf16.mxu0 0
        %780 = vmatpush1.bf16.msra.mxu0 %v763
        %781 = vmatprep.subr.bf16.mxu0 0
        %782 = vmatpush1.bf16.msra.mxu0 0
        %783 = vmatprep.subr.bf16.mxu0 0
        %784 = vmatpush1.bf16.msra.mxu0 0
        %785 = vmatprep.subr.bf16.mxu0 0
        %786 = vmatpush1.bf16.msra.mxu0 0
        %787 = vmatprep.subr.bf16.mxu0 0
        %788 = vmatpush1.bf16.msra.mxu0 0
        %789 = vmatprep.subr.bf16.mxu0 0
        %790 = vmatpush1.bf16.msra.mxu0 0
        %791 = vmatprep.subr.bf16.mxu0 0
        %792 = vmatpush1.bf16.msra.mxu0 0
        %793 = vmatprep.subr.bf16.mxu0 0
        %794 = vmatpush1.bf16.msra.mxu0 0
        %795 = vmatprep.subr.bf16.mxu0 0
        %796 = vmatpush1.bf16.msra.mxu0 0
        %797 = vmatprep.subr.bf16.mxu0 0
        %798 = vmatpush1.bf16.msra.mxu0 0
        %799 = vmatprep.subr.bf16.mxu0 0
        %800 = vmatpush1.bf16.msra.mxu0 0
        %801 = vmatprep.subr.bf16.mxu0 0
        %802 = vmatpush1.bf16.msra.mxu0 0
        %803 = vmatprep.subr.bf16.mxu0 0
        %804 = vmatpush1.bf16.msra.mxu0 0
        %805 = vmatprep.subr.bf16.mxu0 0
        %806 = vmatpush1.bf16.msra.mxu0 0
        %807 = vmatprep.subr.bf16.mxu0 0
        %808 = vmatpush1.bf16.msra.mxu0 0
        %809 = vmatprep.mubr.bf16.mxu0 0
        %810 = vmatmul.mubr.bf16.gmra.mrb[0].mxu0 %v775
        %v811 = vpop.f32.mrb[0].mxu0
        %v812 = vadd.f32 %v770, %v811
        %v813 = vpop.f32.mrb[0].mxu0
        %v814 = vpop.f32.mrb[0].mxu0
        %v815 = vpop.f32.mrb[0].mxu0
        %816 = vdwg.mxu0
        %818 = vset.pattern.permute.xlu0 0
        %819 = vperm.xlu0 %818, %v691
        %v820 = vpop.permute.xlu0 %819
        %v822 = vmul.f32 %v820, %v551
        %v823 = vrot.slane %v551, 1
        %824 = vset.pattern.permute.xlu0 1
        %825 = vperm.xlu0 %824, %v691
        %v826 = vpop.permute.xlu0 %825
        %v828 = vmul.f32 %v826, %v823
        %v829 = vadd.f32 %v822, %v828
        %v830 = vrot.slane %v551, 2
        %831 = vset.pattern.permute.xlu0 2
        %832 = vperm.xlu0 %831, %v691
        %v833 = vpop.permute.xlu0 %832
        %v835 = vmul.f32 %v833, %v830
        %v836 = vadd.f32 %v829, %v835
        %v837 = vrot.slane %v551, 4
        %838 = vset.pattern.permute.xlu0 3
        %839 = vperm.xlu0 %838, %v691
        %v840 = vpop.permute.xlu0 %839
        %v842 = vmul.f32 %v840, %v837
        %v843 = vadd.f32 %v836, %v842
        %v844 = vadd.f32 %v843, %v551
        %846 = vset.pattern.permute.xlu0 0
        %847 = vperm.xlu0 %846, %v752
        %v848 = vpop.permute.xlu0 %847
        %v850 = vmul.f32 %v848, %v844
        %v851 = vrot.slane %v844, 1
        %852 = vset.pattern.permute.xlu0 1
        %853 = vperm.xlu0 %852, %v752
        %v854 = vpop.permute.xlu0 %853
        %v856 = vmul.f32 %v854, %v851
        %v857 = vadd.f32 %v850, %v856
        %v858 = vrot.slane %v844, 2
        %859 = vset.pattern.permute.xlu0 2
        %860 = vperm.xlu0 %859, %v752
        %v861 = vpop.permute.xlu0 %860
        %v863 = vmul.f32 %v861, %v858
        %v864 = vadd.f32 %v857, %v863
        %v865 = vrot.slane %v844, 4
        %866 = vset.pattern.permute.xlu0 3
        %867 = vperm.xlu0 %866, %v752
        %v868 = vpop.permute.xlu0 %867
        %v870 = vmul.f32 %v868, %v865
        %v871 = vadd.f32 %v864, %v870
        %v872 = vadd.f32 %v871, %v844
        %874 = vset.pattern.permute.xlu0 0
        %875 = vperm.xlu0 %874, %v812
        %v876 = vpop.permute.xlu0 %875
        %v878 = vmul.f32 %v876, %v872
        %v879 = vrot.slane %v872, 1
        %880 = vset.pattern.permute.xlu0 1
        %881 = vperm.xlu0 %880, %v812
        %v882 = vpop.permute.xlu0 %881
        %v884 = vmul.f32 %v882, %v879
        %v885 = vadd.f32 %v878, %v884
        %v886 = vrot.slane %v872, 2
        %887 = vset.pattern.permute.xlu0 2
        %888 = vperm.xlu0 %887, %v812
        %v889 = vpop.permute.xlu0 %888
        %v891 = vmul.f32 %v889, %v886
        %v892 = vadd.f32 %v885, %v891
        %v893 = vrot.slane %v872, 4
        %894 = vset.pattern.permute.xlu0 3
        %895 = vperm.xlu0 %894, %v812
        %v896 = vpop.permute.xlu0 %895
        %v898 = vmul.f32 %v896, %v893
        %v899 = vadd.f32 %v892, %v898
        %v900 = vadd.f32 %v899, %v872
        %901 = vst.msk [vmem:[%s411] sm:$0xff] %vm429, %v900
        %s902 = sand.u32 %s258, 1
        %s903 = scalar_lea.sflag [#allocation4], %s902
        %s904 = sand.u32 %s258, 1
        %s905 = smul.addr %s904, 8
        %s906 = scalar_lea.vmem [#allocation7], %s905
        // Predicated region
        $region69: #{tpu_custom_call.1} parent=59 // pred_check
          %p907 = pneg %p268
        $region70: #{tpu_custom_call.1} parent=59 // pred_check_branch
          %909 = sbr.rel (%p907) target = $region72
        $region71: #{tpu_custom_call.1} parent=59 // pred_region
          %s911 = ssub.s32 128, 128
          %912 = vsyncadd %s903, %s911
          %s913 = smul.addr %s30, 128
          %s914 = scalar_lea.hbm %s10, %s913
          %s916 = sshll.u32 %s906, 4
          %s917 = int_to_ptr.vmem [resolvable:$true] %s916
          %919 = dma.vmem_to_hbm [thread:$0]  %s917, 128, %s914, %s903
        $region72: #{tpu_custom_call.1} parent=59 // pred_fallthru
          _
      $region60: #{tpu_custom_call.1} parent=5 // pred_fallthru
        _
      %p920 = scmp.le.s32.totalorder 2, %s25
      // Predicated region
      $region73: #{tpu_custom_call.1} parent=5 // pred_check
        %p921 = pneg %p920
      $region74: #{tpu_custom_call.1} parent=5 // pred_check_branch
        %923 = sbr.rel (%p921) target = $region76
      $region75: #{tpu_custom_call.1} parent=5 // pred_region
        %s924 = ssub.s32 %s25, 2
        // Predicated region
        $region77: #{tpu_custom_call.1} parent=75 // pred_check
          %p925 = pneg %p274
        $region78: #{tpu_custom_call.1} parent=75 // pred_check_branch
          %927 = sbr.rel (%p925) target = $region80
        $region79: #{tpu_custom_call.1} parent=75 // pred_region
          %s928 = sand.u32 %s259, 1
          %s929 = scalar_lea.sflag [#allocation4], %s928
          %s930 = sand.u32 %s259, 1
          %s931 = smul.addr %s930, 8
          %s932 = scalar_lea.vmem [#allocation7], %s931
          %933 = dma.done %s929, 128
        $region80: #{tpu_custom_call.1} parent=75 // pred_fallthru
          _
      $region76: #{tpu_custom_call.1} parent=5 // pred_fallthru
        _
    $region6: #{tpu_custom_call.1} parent=1 // loop_footer
      %s29 = sadd.s32 1, %s25
    $region7: #{tpu_custom_call.1} parent=1 // loop_footer_branch
      %24 = sbr.rel target = $region3
    $region8: #{tpu_custom_call.1} parent=1 // loop_exit
      _
    %934 = vsyncpa [#allocation3], 1
    %s935 = scalar_lea.sflag [#allocation3], 1
    %936 = vsyncpa %s935, 1
    %937 = vsyncpa [#allocation6], 1
    %s938 = scalar_lea.sflag [#allocation6], 1
    %939 = vsyncpa %s938, 1
    %940 = vsyncpa [#allocation4], 1
    %s941 = scalar_lea.sflag [#allocation4], 1
    %942 = vsyncpa %s941, 1

</llo_original>
